<compile_context>
chip_gen: v5e
topology: v5e:2x2
jax: 0.10.0
libtpu: 0.0.40
codegen_flags: <defaults>
</compile_context>

<pallas_src>
import jax
import jax.numpy as jnp
from jax import lax
from jax.experimental import pallas as pl
from jax.experimental.pallas import tpu as pltpu


def _round_up(x, m):
    return ((x + m - 1) // m) * m


def edge_mlp_kernel(xt_ref, w1t_ref, b1_ref, w2t_ref, b2_ref, ot_ref):
    # First Linear (transposed): h^T = W1^T @ x^T + b1, single K=3f matmul, f32 accum.
    h = jnp.dot(w1t_ref[...], xt_ref[...], preferred_element_type=jnp.float32)
    h = h + b1_ref[...]                     # (hid, 1) broadcast over lanes (edges)
    h = jnp.maximum(h, 0.0)                 # ReLU

    # LayerNorm over the hidden axis (sublane axis here); eps matches torch's 1e-5.
    # gamma/beta are already folded into W2'/b2', so only normalize.
    mean = jnp.mean(h, axis=0, keepdims=True)          # (1, tm)
    c = h - mean
    var = jnp.mean(c * c, axis=0, keepdims=True)
    hn = c * lax.rsqrt(var + 1e-5)

    # Second Linear (affine folded): out^T = W2'^T @ hn^T + b2'
    out = jnp.dot(w2t_ref[...], hn.astype(w2t_ref.dtype),
                  preferred_element_type=jnp.float32)
    ot_ref[...] = (out + b2_ref[...]).astype(ot_ref.dtype)


def edge_mlp_pallas(src, dest, edge_attr, w1, b1, gamma, beta, w2, b2,
                    *, tm=8192, matmul_dtype=None, packed_xt=None,
                    transposed_output=False):
    """Forward pass of smallEdgeModel.

    src/dest/edge_attr: (E, f).  w1: (3f, hid), b1: (hid,).  gamma/beta: (hid,).
    w2: (hid, out), b2: (out,).
    packed_xt: optional pre-packed (3f, E) edges-on-lanes operand; if given, the
               wrapper's layout pass over src/dest/edge_attr is skipped entirely.
    Returns (E, out) unless transposed_output=True (then (out, E), no final transpose).
    """
    if packed_xt is not None:
        in_dim, E = packed_xt.shape
        f = in_dim // 3
    else:
        E, f = src.shape
        in_dim = 3 * f
    hid_dim = w1.shape[1]
    out_dim = w2.shape[1]
    assert w1.shape[0] == in_dim, "W1 rows must equal 3 * per-input feature dim"

    f32 = jnp.float32
    gamma = gamma.reshape(1, hid_dim).astype(f32)
    beta = beta.reshape(1, hid_dim).astype(f32)
    b1t = b1.reshape(hid_dim, 1).astype(f32)
    b2 = b2.reshape(1, out_dim).astype(f32)
    w2 = w2.astype(f32)

    # Fold LayerNorm affine into the second Linear (exact):
    #   (c_norm*gamma + beta) @ W2 + b2 == c_norm @ (diag(gamma) W2) + (beta @ W2 + b2)
    w2t = (gamma.reshape(hid_dim, 1) * w2).T            # (out, hid)
    b2t = (beta @ w2 + b2).T                            # (out, 1)
    w1t = w1.astype(f32).T                              # (hid, 3f)

    op_dtype = f32 if matmul_dtype is None else matmul_dtype
    if packed_xt is None:
        # Single layout pass: transpose + pack + (optional) downcast, fused by XLA.
        # The (E, 3f) row-major concat of the original module never materializes.
        xt = jnp.concatenate([src.T, dest.T, edge_attr.T], axis=0).astype(op_dtype)
    else:
        xt = packed_xt.astype(op_dtype)
    w1t = w1t.astype(op_dtype)
    w2t = w2t.astype(op_dtype)

    # ---- lane tiling over the edge axis -------------------------------------
    tm_req = max(128, (int(tm) // 128) * 128)
    if E > tm_req:
        tm_eff = tm_req
    else:
        # Small problem: still try to split into >= 2 grid steps so
        # dimension_semantics=("parallel",) can shard across v7x's two TensorCores.
        half = _round_up(pl.cdiv(E, 2), 128)
        tm_eff = half if half < E else E
    grid = (pl.cdiv(E, tm_eff),)

    # VMEM budget: double-buffered in/out blocks + live (hid, tm) f32 intermediates.
    in_itemsize = jnp.dtype(op_dtype).itemsize
    block_bytes = (in_dim * in_itemsize + out_dim * 4) * tm_eff
    interm_bytes = 8 * hid_dim * tm_eff * 4
    vmem_limit = int(min(max(2 * block_bytes + interm_bytes + (2 << 20), 16 << 20),
                         40 << 20))

    out_t = pl.pallas_call(
        edge_mlp_kernel,
        out_shape=jax.ShapeDtypeStruct((out_dim, E), jnp.float32),
        grid_spec=pltpu.PrefetchScalarGridSpec(
            num_scalar_prefetch=0,
            grid=grid,
            in_specs=[
                pl.BlockSpec((in_dim, tm_eff), lambda i: (0, i)),    # x^T tile
                pl.BlockSpec((hid_dim, in_dim), lambda i: (0, 0)),   # W1^T  (resident)
                pl.BlockSpec((hid_dim, 1), lambda i: (0, 0)),        # b1    (resident)
                pl.BlockSpec((out_dim, hid_dim), lambda i: (0, 0)),  # W2'^T (resident)
                pl.BlockSpec((out_dim, 1), lambda i: (0, 0)),        # b2'   (resident)
            ],
            out_specs=pl.BlockSpec((out_dim, tm_eff), lambda i: (0, i)),
        ),
        compiler_params=pltpu.CompilerParams(
            dimension_semantics=("parallel",),
            vmem_limit_bytes=vmem_limit),
    )(xt, w1t, b1t, w2t, b2t)

    if transposed_output:
        return out_t
    # Layout plumbing back to the module's (E, out_dim) convention.
    # TODO(synk): downstream consumers that accept (out_dim, E) should pass
    # transposed_output=True to skip this extra pass over the output.
    return out_t.T


def edge_mlp_ref(src, dest, edge_attr, w1, b1, gamma, beta, w2, b2):
    x = jnp.concatenate([src, dest, edge_attr], axis=1)
    h = jnp.maximum(x @ w1 + b1.reshape(1, -1), 0.0)
    mean = jnp.mean(h, axis=-1, keepdims=True)
    var = jnp.mean((h - mean) ** 2, axis=-1, keepdims=True)
    hn = (h - mean) / jnp.sqrt(var + 1e-5) * gamma.reshape(1, -1) + beta.reshape(1, -1)
    return hn @ w2 + b2.reshape(1, -1)


if __name__ == "__main__":
    # Small shapes consistent with the module: src/dest/edge_attr are [E, f],
    # concat gives in_dim = 3*f.
    E = 16
    f = 8
    in_dim = 3 * f    # 24
    hid_dim = 32
    out_dim = 16

    key = jax.random.PRNGKey(0)
    k_src, k_dst, k_edg, k_w1, k_b1, k_w2, k_b2 = jax.random.split(key, 7)

    src = jax.random.normal(k_src, (E, f), dtype=jnp.float32)
    dest = jax.random.normal(k_dst, (E, f), dtype=jnp.float32)
    edge_attr = jax.random.normal(k_edg, (E, f), dtype=jnp.float32)

    bound1 = 1.0 / jnp.sqrt(in_dim)
    w1 = jax.random.uniform(k_w1, (in_dim, hid_dim), jnp.float32, -bound1, bound1)
    b1 = jax.random.uniform(k_b1, (1, hid_dim), jnp.float32, -bound1, bound1)
    gamma = jnp.ones((1, hid_dim), jnp.float32)    # LayerNorm weight
    beta = jnp.zeros((1, hid_dim), jnp.float32)    # LayerNorm bias
    bound2 = 1.0 / jnp.sqrt(hid_dim)
    w2 = jax.random.uniform(k_w2, (hid_dim, out_dim), jnp.float32, -bound2, bound2)
    b2 = jax.random.uniform(k_b2, (1, out_dim), jnp.float32, -bound2, bound2)

    # 1) Small case (single lane tile).
    out = edge_mlp_pallas(src, dest, edge_attr, w1, b1, gamma, beta, w2, b2)
    out = jax.block_until_ready(out)
    ref = edge_mlp_ref(src, dest, edge_attr, w1, b1, gamma, beta, w2, b2)
    assert out.shape == (E, out_dim)
    assert jnp.allclose(out, ref, atol=1e-4, rtol=1e-4), "mismatch vs reference (small)"

    # 2) Non-multiple-of-128 E: exercises grid>=2 (megacore split) + padded last tile.
    E2 = 1000
    k2a, k2b, k2c = jax.random.split(jax.random.PRNGKey(1), 3)
    src2 = jax.random.normal(k2a, (E2, f), dtype=jnp.float32)
    dest2 = jax.random.normal(k2b, (E2, f), dtype=jnp.float32)
    edge2 = jax.random.normal(k2c, (E2, f), dtype=jnp.float32)
    ref2 = edge_mlp_ref(src2, dest2, edge2, w1, b1, gamma, beta, w2, b2)

    out2 = edge_mlp_pallas(src2, dest2, edge2, w1, b1, gamma, beta, w2, b2)
    out2 = jax.block_until_ready(out2)
    assert out2.shape == (E2, out_dim)
    assert jnp.allclose(out2, ref2, atol=1e-4, rtol=1e-4), "mismatch vs reference (tiled)"

    # 3) bf16 matmul operands (v5e/v6e/v7x MXU path) -- looser tolerance by design.
    out2_bf16 = edge_mlp_pallas(src2, dest2, edge2, w1, b1, gamma, beta, w2, b2,
                                matmul_dtype=jnp.bfloat16)
    out2_bf16 = jax.block_until_ready(out2_bf16)
    assert jnp.allclose(out2_bf16, ref2, atol=1e-1, rtol=5e-2), "mismatch (bf16 path)"

    # 4) E > tm path: several full lane tiles + a partial trailing tile.
    E3 = 5000
    k3a, k3b, k3c = jax.random.split(jax.random.PRNGKey(2), 3)
    src3 = jax.random.normal(k3a, (E3, f), dtype=jnp.float32)
    dest3 = jax.random.normal(k3b, (E3, f), dtype=jnp.float32)
    edge3 = jax.random.normal(k3c, (E3, f), dtype=jnp.float32)
    out3 = edge_mlp_pallas(src3, dest3, edge3, w1, b1, gamma, beta, w2, b2, tm=1024)
    out3 = jax.block_until_ready(out3)
    ref3 = edge_mlp_ref(src3, dest3, edge3, w1, b1, gamma, beta, w2, b2)
    assert out3.shape == (E3, out_dim)
    assert jnp.allclose(out3, ref3, atol=1e-4, rtol=1e-4), "mismatch vs reference (E>tm)"

    print("KERNEL_OK")
</pallas_src>

<mosaic_0001>
module attributes {stable_mosaic.version = 11 : i64} {
  func.func @edge_mlp_kernel(%arg0: i32, %arg1: memref<24x16xf32, #tpu.memory_space<vmem>>, %arg2: memref<32x24xf32, #tpu.memory_space<vmem>>, %arg3: memref<32x1xf32, #tpu.memory_space<vmem>>, %arg4: memref<16x32xf32, #tpu.memory_space<vmem>>, %arg5: memref<16x1xf32, #tpu.memory_space<vmem>>, %arg6: memref<16x16xf32, #tpu.memory_space<vmem>>) attributes {dimension_semantics = [#tpu.dimension_semantics<parallel>], iteration_bounds = array<i64: 1>, scalar_prefetch = 0 : i64, scratch_operands = 0 : i64, tpu.core_type = #tpu.core_type<tc>, window_params = [{transform_indices = @transform_0, window_bounds = array<i64: 24, 16>}, {pipeline_mode = #tpu.pipeline_mode<synchronous>, transform_indices = @transform_1, window_bounds = array<i64: 32, 24>}, {pipeline_mode = #tpu.pipeline_mode<synchronous>, transform_indices = @transform_2, window_bounds = array<i64: 32, 1>}, {pipeline_mode = #tpu.pipeline_mode<synchronous>, transform_indices = @transform_3, window_bounds = array<i64: 16, 32>}, {pipeline_mode = #tpu.pipeline_mode<synchronous>, transform_indices = @transform_4, window_bounds = array<i64: 16, 1>}, {transform_indices = @transform_5, window_bounds = array<i64: 16, 16>}]} {
    %c0 = arith.constant 0 : index
    %c0_0 = arith.constant 0 : index
    %0 = vector.load %arg2[%c0, %c0_0] : memref<32x24xf32, #tpu.memory_space<vmem>>, vector<32x24xf32>
    %c0_1 = arith.constant 0 : index
    %c0_2 = arith.constant 0 : index
    %1 = vector.load %arg1[%c0_1, %c0_2] : memref<24x16xf32, #tpu.memory_space<vmem>>, vector<24x16xf32>
    %cst = arith.constant dense<0.000000e+00> : vector<32x16xf32>
    %2 = tpu.matmul %0, %1, %cst {dimension_numbers = #tpu.dot_dimension_numbers<[1], [0], [0], [1], [0, 0, 1, 1], [], []>} : vector<32x24xf32>, vector<24x16xf32>, vector<32x16xf32> -> vector<32x16xf32>
    %c0_3 = arith.constant 0 : index
    %c0_4 = arith.constant 0 : index
    %3 = vector.load %arg3[%c0_3, %c0_4] : memref<32x1xf32, #tpu.memory_space<vmem>>, vector<32x1xf32>
    %4 = vector.broadcast %3 : vector<32x1xf32> to vector<32x16xf32>
    %5 = arith.addf %2, %4 : vector<32x16xf32>
    %cst_5 = arith.constant 0.000000e+00 : f32
    %6 = vector.broadcast %cst_5 : f32 to vector<32x16xf32>
    %7 = arith.maximumf %5, %6 : vector<32x16xf32>
    %cst_6 = arith.constant dense<0.000000e+00> : vector<16xf32>
    %8 = vector.multi_reduction <add>, %7, %cst_6 [0] : vector<32x16xf32> to vector<16xf32>
    %9 = vector.shape_cast %8 : vector<16xf32> to vector<1x16xf32>
    %cst_7 = arith.constant 3.200000e+01 : f32
    %10 = vector.broadcast %cst_7 : f32 to vector<1x16xf32>
    %11 = arith.divf %9, %10 : vector<1x16xf32>
    %12 = vector.broadcast %11 : vector<1x16xf32> to vector<32x16xf32>
    %13 = arith.subf %7, %12 : vector<32x16xf32>
    %14 = arith.mulf %13, %13 : vector<32x16xf32>
    %cst_8 = arith.constant dense<0.000000e+00> : vector<16xf32>
    %15 = vector.multi_reduction <add>, %14, %cst_8 [0] : vector<32x16xf32> to vector<16xf32>
    %16 = vector.shape_cast %15 : vector<16xf32> to vector<1x16xf32>
    %cst_9 = arith.constant 3.200000e+01 : f32
    %17 = vector.broadcast %cst_9 : f32 to vector<1x16xf32>
    %18 = arith.divf %16, %17 : vector<1x16xf32>
    %cst_10 = arith.constant 9.99999974E-6 : f32
    %19 = vector.broadcast %cst_10 : f32 to vector<1x16xf32>
    %20 = arith.addf %18, %19 : vector<1x16xf32>
    %21 = math.rsqrt %20 : vector<1x16xf32>
    %22 = vector.broadcast %21 : vector<1x16xf32> to vector<32x16xf32>
    %23 = arith.mulf %13, %22 : vector<32x16xf32>
    %c0_11 = arith.constant 0 : index
    %c0_12 = arith.constant 0 : index
    %24 = vector.load %arg4[%c0_11, %c0_12] : memref<16x32xf32, #tpu.memory_space<vmem>>, vector<16x32xf32>
    %cst_13 = arith.constant dense<0.000000e+00> : vector<16x16xf32>
    %25 = tpu.matmul %24, %23, %cst_13 {dimension_numbers = #tpu.dot_dimension_numbers<[1], [0], [0], [1], [0, 0, 1, 1], [], []>} : vector<16x32xf32>, vector<32x16xf32>, vector<16x16xf32> -> vector<16x16xf32>
    %c0_14 = arith.constant 0 : index
    %c0_15 = arith.constant 0 : index
    %26 = vector.load %arg5[%c0_14, %c0_15] : memref<16x1xf32, #tpu.memory_space<vmem>>, vector<16x1xf32>
    %27 = vector.broadcast %26 : vector<16x1xf32> to vector<16x16xf32>
    %28 = arith.addf %25, %27 : vector<16x16xf32>
    %c0_16 = arith.constant 0 : index
    %c0_17 = arith.constant 0 : index
    %29 = vector.load %arg6[%c0_16, %c0_17] : memref<16x16xf32, #tpu.memory_space<vmem>>, vector<16x16xf32>
    tpu.vector_store %arg6[%c0_16, %c0_17], %28 {strides = array<i32>} : memref<16x16xf32, #tpu.memory_space<vmem>>, vector<16x16xf32>,
    return
  }
  func.func @transform_0(%arg0: i32) -> (i32, i32) {
    %c0_i32 = arith.constant 0 : i32
    %c0_i32_0 = arith.constant 0 : i32
    return %c0_i32, %arg0 : i32, i32
  }
  func.func @transform_1(%arg0: i32) -> (i32, i32) {
    %c0_i32 = arith.constant 0 : i32
    %c0_i32_0 = arith.constant 0 : i32
    %c0_i32_1 = arith.constant 0 : i32
    return %c0_i32, %c0_i32_0 : i32, i32
  }
  func.func @transform_2(%arg0: i32) -> (i32, i32) {
    %c0_i32 = arith.constant 0 : i32
    %c0_i32_0 = arith.constant 0 : i32
    %c0_i32_1 = arith.constant 0 : i32
    return %c0_i32, %c0_i32_0 : i32, i32
  }
  func.func @transform_3(%arg0: i32) -> (i32, i32) {
    %c0_i32 = arith.constant 0 : i32
    %c0_i32_0 = arith.constant 0 : i32
    %c0_i32_1 = arith.constant 0 : i32
    return %c0_i32, %c0_i32_0 : i32, i32
  }
  func.func @transform_4(%arg0: i32) -> (i32, i32) {
    %c0_i32 = arith.constant 0 : i32
    %c0_i32_0 = arith.constant 0 : i32
    %c0_i32_1 = arith.constant 0 : i32
    return %c0_i32, %c0_i32_0 : i32, i32
  }
  func.func @transform_5(%arg0: i32) -> (i32, i32) {
    %c0_i32 = arith.constant 0 : i32
    %c0_i32_0 = arith.constant 0 : i32
    return %c0_i32, %arg0 : i32, i32
  }
}

</mosaic_0001>

<llo_original>
// kernel: tpu_custom_call.1
$region0: #{tpu_custom_call.1}
  #allocation0 [shape = 'u32[]', space=smem, size = 0x4, offset = 0x4, fixed_abs, tag = 'smem constant byte address 0x4 - core index']
  #allocation1 [shape = 'u32[72,128]{1,0:T(1,128)}', space=vmem, size = 0x9000, scoped, tag = 'internal scratch']
  %s0 = inlined_call_operand.vmem [shape: f32[24,16], index: 0, kind: input, shape index: {}]
  %s1 = inlined_call_operand.vmem [shape: f32[32,24], index: 1, kind: input, shape index: {}]
  %s2 = inlined_call_operand.vmem [shape: f32[32,1], index: 2, kind: input, shape index: {}]
  %s3 = inlined_call_operand.vmem [shape: f32[16,32], index: 3, kind: input, shape index: {}]
  %s4 = inlined_call_operand.vmem [shape: f32[16,1], index: 4, kind: input, shape index: {}]
  %s5 = inlined_call_operand.hbm [shape: f32[16,16], index: 5, kind: output, shape index: {}]
  %s6 = sld [smem:[#allocation0]]
  $region30: #{tpu_custom_call.1} parent=0
    _
  %s8 = ssub.s32 1, %s6
  %s9 = scalar_select 0, %s8, %s6
  $region1: #{tpu_custom_call.1} parent=0
    #allocation2 [shape = 'u8[8192]{0}', space=vmem, size = 0x2000, scoped, tag = 'output window, operand 0, single buffered']
    #allocation3 [shape = 's32[1]{0}', space=sflag, size = 0x4, scoped, tag = 'scoped memory for tpu_custom_call.1']
    %10 = vsyncpa [#allocation3], 0
    // Predicated region
    $region2: #{tpu_custom_call.1} parent=1 // pred_check
      _
    $region3: #{tpu_custom_call.1} parent=1 // pred_check_branch
      %12 = sbr.rel (0) target = $region5
    $region4: #{tpu_custom_call.1} parent=1 // pred_region
      _
    $region5: #{tpu_custom_call.1} parent=1 // pred_fallthru
      _
    // Predicated region
    $region6: #{tpu_custom_call.1} parent=1 // pred_check
      _
    $region7: #{tpu_custom_call.1} parent=1 // pred_check_branch
      %14 = sbr.rel (0) target = $region9
    $region8: #{tpu_custom_call.1} parent=1 // pred_region
      _
    $region9: #{tpu_custom_call.1} parent=1 // pred_fallthru
      _
    // Predicated region
    $region10: #{tpu_custom_call.1} parent=1 // pred_check
      _
    $region11: #{tpu_custom_call.1} parent=1 // pred_check_branch
      %16 = sbr.rel (0) target = $region13
    $region12: #{tpu_custom_call.1} parent=1 // pred_region
      _
    $region13: #{tpu_custom_call.1} parent=1 // pred_fallthru
      _
    // Predicated region
    $region14: #{tpu_custom_call.1} parent=1 // pred_check
      _
    $region15: #{tpu_custom_call.1} parent=1 // pred_check_branch
      %18 = sbr.rel (0) target = $region17
    $region16: #{tpu_custom_call.1} parent=1 // pred_region
      _
    $region17: #{tpu_custom_call.1} parent=1 // pred_fallthru
      _
    // Predicated region
    $region18: #{tpu_custom_call.1} parent=1 // pred_check
      _
    $region19: #{tpu_custom_call.1} parent=1 // pred_check_branch
      %20 = sbr.rel (0) target = $region21
    $region20: #{tpu_custom_call.1} parent=1 // pred_region
      _
    $region21: #{tpu_custom_call.1} parent=1 // pred_fallthru
      _
    %v21 = vld [vmem:[%s1] sm:$0xff]
    %v22 = vld [vmem:[%s1 + $0x8] sm:$0xff]
    %v23 = vld [vmem:[%s1 + $0x10] sm:$0xff]
    %v24 = vld [vmem:[%s1 + $0x18] sm:$0xff]
    %v25 = vld [vmem:[%s0] sm:$0xff]
    %v26 = vld [vmem:[%s0 + $0x8] sm:$0xff]
    %v27 = vld [vmem:[%s0 + $0x10] sm:$0xff]
    %v28 = vld [vmem:[%s2] sm:$0xff]
    %v29 = vld [vmem:[%s2 + $0x8] sm:$0xff]
    %v30 = vld [vmem:[%s2 + $0x10] sm:$0xff]
    %v31 = vld [vmem:[%s2 + $0x18] sm:$0xff]
    %33 = vset.pattern.permute.xlu0 0
    %34 = vperm.xlu0 %33, %v28
    %v35 = vpop.permute.xlu0 %34
    %38 = vset.pattern.permute.xlu0 0
    %39 = vperm.xlu0 %38, %v29
    %v40 = vpop.permute.xlu0 %39
    %43 = vset.pattern.permute.xlu0 0
    %44 = vperm.xlu0 %43, %v30
    %v45 = vpop.permute.xlu0 %44
    %48 = vset.pattern.permute.xlu0 0
    %49 = vperm.xlu0 %48, %v31
    %v50 = vpop.permute.xlu0 %49
    %vm52 = vcmask 195584
    %v54 = vsel %vm52, %v21, 0
    %v57 = vsel %vm52, %v22, 0
    %v60 = vsel %vm52, %v23, 0
    %v63 = vsel %vm52, %v24, 0
    %65 = vmatpush.msra.mxu0 0.0
    %66 = vmatpush.msra.mxu0 0.0
    %67 = vmatpush.msra.mxu0 0.0
    %68 = vmatpush.msra.mxu0 0.0
    %69 = vmatpush.msra.mxu0 0.0
    %70 = vmatpush.msra.mxu0 0.0
    %71 = vmatpush.msra.mxu0 0.0
    %72 = vmatpush.msra.mxu0 0.0
    %73 = vmatpush.msra.mxu0 0.0
    %74 = vmatpush.msra.mxu0 0.0
    %75 = vmatpush.msra.mxu0 0.0
    %76 = vmatpush.msra.mxu0 0.0
    %77 = vmatpush.msra.mxu0 0.0
    %78 = vmatpush.msra.mxu0 %v27
    %79 = vmatpush.msra.mxu0 %v26
    %80 = vmatpush.msra.mxu0 %v25
    %81 = vmatmul.f32.gmra.mxu0 %v54
    %v82 = vpop.f32.mrf.mxu0
    %v83 = vadd.f32 %v35, %v82
    %84 = vmatmul.f32.gmra.mxu0 %v57
    %v85 = vpop.f32.mrf.mxu0
    %v86 = vadd.f32 %v40, %v85
    %87 = vmatmul.f32.gmra.mxu0 %v60
    %v88 = vpop.f32.mrf.mxu0
    %v89 = vadd.f32 %v45, %v88
    %90 = vmatmul.f32.gmra.mxu0 %v63
    %v91 = vpop.f32.mrf.mxu0
    %v92 = vadd.f32 %v50, %v91
    %93 = vdwg.mxu0
    %v94 = vmax.f32 %v83, 0.0
    %v95 = vmax.f32 %v86, 0.0
    %v96 = vmax.f32 %v89, 0.0
    %v97 = vmax.f32 %v92, 0.0
    %vm98 = vcmask 130048
    %v99 = vsel %vm98, %v94, 0.0
    %v100 = vsel %vm98, %v95, 0.0
    %v101 = vadd.f32 %v99, %v100
    %v102 = vsel %vm98, %v96, 0.0
    %v103 = vadd.f32 %v101, %v102
    %v104 = vsel %vm98, %v97, 0.0
    %v105 = vadd.f32 %v103, %v104
    %v106 = vrot.slane %v105, 4
    %v107 = vadd.f32 %v105, %v106
    %v108 = vrot.slane %v107, 2
    %v109 = vadd.f32 %v107, %v108
    %v110 = vrot.slane %v109, 1
    %v111 = vadd.f32 %v109, %v110
    %v112 = vrcp.pop 32.0
    %v113 = vmul.f32 32.0, %v112
    %v114 = vsub.f32 1.0, %v113
    %v115 = vmul.f32 %v112, %v114
    %v116 = vadd.f32 %v112, %v115
    %vm117 = vweird.f32 %v112
    %v118 = vsel %vm117, %v112, %v116
    %v119 = vmul.f32 %v111, %v118
    %v120 = vsub.f32 %v94, %v119
    %v121 = vsub.f32 %v95, %v119
    %v122 = vsub.f32 %v96, %v119
    %v123 = vsub.f32 %v97, %v119
    %v124 = vmul.f32 %v120, %v120
    %v125 = vmul.f32 %v121, %v121
    %v126 = vmul.f32 %v122, %v122
    %v127 = vmul.f32 %v123, %v123
    %v128 = vsel %vm98, %v124, 0.0
    %v129 = vsel %vm98, %v125, 0.0
    %v130 = vadd.f32 %v128, %v129
    %v131 = vsel %vm98, %v126, 0.0
    %v132 = vadd.f32 %v130, %v131
    %v133 = vsel %vm98, %v127, 0.0
    %v134 = vadd.f32 %v132, %v133
    %v135 = vrot.slane %v134, 4
    %v136 = vadd.f32 %v134, %v135
    %v137 = vrot.slane %v136, 2
    %v138 = vadd.f32 %v136, %v137
    %v139 = vrot.slane %v138, 1
    %v140 = vadd.f32 %v138, %v139
    %v141 = vmul.f32 %v140, %v118
    %v142 = vadd.f32 %v141, 1e-05
    %v143 = vrsqrt.pop %v142
    %v144 = vmul.f32 %v143, %v142
    %v145 = vmul.f32 %v144, %v143
    %v146 = vmul.f32 0.5, %v145
    %v147 = vsub.f32 1.5, %v146
    %v148 = vmul.f32 %v143, %v147
    %vm149 = vweird.f32 %v142
    %vm150 = vweird.f32 %v143
    %vm151 = vmor %vm149, %vm150
    %v152 = vsel %vm151, %v143, %v148
    %v153 = vmul.f32 %v120, %v152
    %v154 = vmul.f32 %v121, %v152
    %v155 = vmul.f32 %v122, %v152
    %v156 = vmul.f32 %v123, %v152
    %v157 = vld [vmem:[%s3] sm:$0xff]
    %v158 = vld [vmem:[%s3 + $0x8] sm:$0xff]
    %v159 = vld [vmem:[%s4] sm:$0xff]
    %v160 = vld [vmem:[%s4 + $0x8] sm:$0xff]
    %162 = vset.pattern.permute.xlu0 0
    %163 = vperm.xlu0 %162, %v159
    %v164 = vpop.permute.xlu0 %163
    %167 = vset.pattern.permute.xlu0 0
    %168 = vperm.xlu0 %167, %v160
    %v169 = vpop.permute.xlu0 %168
    %vm171 = vcmask 261120
    %v173 = vsel %vm171, %v157, 0
    %v176 = vsel %vm171, %v158, 0
    %178 = vmatpush.msra.mxu0 0.0
    %179 = vmatpush.msra.mxu0 0.0
    %180 = vmatpush.msra.mxu0 0.0
    %181 = vmatpush.msra.mxu0 0.0
    %182 = vmatpush.msra.mxu0 0.0
    %183 = vmatpush.msra.mxu0 0.0
    %184 = vmatpush.msra.mxu0 0.0
    %185 = vmatpush.msra.mxu0 0.0
    %186 = vmatpush.msra.mxu0 0.0
    %187 = vmatpush.msra.mxu0 0.0
    %188 = vmatpush.msra.mxu0 0.0
    %189 = vmatpush.msra.mxu0 0.0
    %190 = vmatpush.msra.mxu0 %v156
    %191 = vmatpush.msra.mxu0 %v155
    %192 = vmatpush.msra.mxu0 %v154
    %193 = vmatpush.msra.mxu0 %v153
    %194 = vmatmul.f32.gmra.mxu0 %v173
    %v195 = vpop.f32.mrf.mxu0
    %v196 = vadd.f32 %v164, %v195
    %197 = vmatmul.f32.gmra.mxu0 %v176
    %v198 = vpop.f32.mrf.mxu0
    %v199 = vadd.f32 %v169, %v198
    %200 = vdwg.mxu0
    %201 = vst.msk [vmem:[#allocation2] sm:$0xff] %vm98, %v196
    %202 = vst.msk [vmem:[#allocation2 + $0x8] sm:$0xff] %vm98, %v199
    // Predicated region
    $region22: #{tpu_custom_call.1} parent=1 // pred_check
      _
    $region23: #{tpu_custom_call.1} parent=1 // pred_check_branch
      %204 = sbr.rel (0) target = $region25
    $region24: #{tpu_custom_call.1} parent=1 // pred_region
      %206 = vsyncadd [#allocation3], 0
      %s207 = sshll.u32 [#allocation2], 4
      %s208 = int_to_ptr.vmem [resolvable:$true] %s207
      %s209 = sshll.u32 %s5, 4
      %s210 = int_to_ptr.hbm [resolvable:$true] %s209
      %215 = dma.vmem_to_hbm [thread:$0]  %s208, 256, %s210, [#allocation3], 128, 128, 8
    $region25: #{tpu_custom_call.1} parent=1 // pred_fallthru
      _
    // Predicated region
    $region26: #{tpu_custom_call.1} parent=1 // pred_check
      _
    $region27: #{tpu_custom_call.1} parent=1 // pred_check_branch
      %217 = sbr.rel (0) target = $region29
    $region28: #{tpu_custom_call.1} parent=1 // pred_region
      %219 = dma.done [#allocation3], 256
    $region29: #{tpu_custom_call.1} parent=1 // pred_fallthru
      _
    %220 = vsyncpa [#allocation3], 1

</llo_original>
